<compile_context>
chip_gen: v5e
topology: v5e:2x2
jax: 0.10.0
libtpu: 0.0.40
codegen_flags: <defaults>
</compile_context>

<pallas_src>
import jax
import jax.numpy as jnp
from jax.experimental import pallas as pl
from jax.experimental.pallas import tpu as pltpu

LANE = 128          # vreg lane width (fast axis)
SUBLANES = 8        # vreg sublanes
TILE_ROWS = 1024    # rows per grid step: (1024,128) f32 = 512 KiB / input buffer
NUM_SPLITS = 2      # leading "parallel" grid axis (2 TCs on v7x)
X_PAD = -1e4        # sigmoid(X_PAD)=0 and softplus(X_PAD)=0 -> padding adds 0


def _cdiv(a, b):
    return -(-a // b)


def _round_up(a, b):
    return _cdiv(a, b) * b


def _dice_bce_kernel(x_ref, t_ref, acc_ref):
    """Accumulate per-lane partial sums into the resident output block.

    acc_ref block: (1, 4, 8, 128) f32, resident across the arbitrary axis:
      [0,0] sum(sigmoid(x) * t)   (intersection)
      [0,1] sum(sigmoid(x))
      [0,2] sum(t)
      [0,3] sum of per-element BCE terms
    """
    i = pl.program_id(1)

    @pl.when(i == 0)
    def _():
        acc_ref[...] = jnp.zeros_like(acc_ref)

    x = x_ref[...].astype(jnp.float32)
    t = t_ref[...].astype(jnp.float32)

    # Shared transcendental: e = exp(-|x|)
    e = jnp.exp(-jnp.abs(x))
    p = jnp.where(x >= 0.0, 1.0, e) / (1.0 + e)          # sigmoid(x)

    le = jnp.log1p(e)
    log_p = jnp.minimum(x, 0.0) - le                     # log(sigmoid(x))
    log_1mp = -jnp.maximum(x, 0.0) - le                  # log(1 - sigmoid(x))
    # F.binary_cross_entropy clamps log terms at -100 (PyTorch semantics).
    bce = -(t * jnp.maximum(log_p, -100.0)
            + (1.0 - t) * jnp.maximum(log_1mp, -100.0))

    def rowsum(v):
        # (rows, 128) -> (8, 128): pure vreg-wise VPU adds, no cross-lane work.
        return jnp.sum(v.reshape(-1, SUBLANES, LANE), axis=0)

    acc_ref[0, 0] += rowsum(p * t)
    acc_ref[0, 1] += rowsum(p)
    acc_ref[0, 2] += rowsum(t)
    acc_ref[0, 3] += rowsum(bce)


@jax.jit
def dice_bce_loss(inputs, targets, smooth=1.0):
    """Pallas TPU implementation of DiceBCELoss.forward (smooth=1)."""
    n = inputs.size
    x = inputs.reshape(-1)
    t = targets.reshape(-1)

    rows = _round_up(max(_cdiv(n, LANE), 1), SUBLANES)
    block_rows = min(TILE_ROWS, rows)
    tiles = _round_up(_cdiv(rows, block_rows), NUM_SPLITS)
    rows_padded = tiles * block_rows
    n_pad = rows_padded * LANE
    tiles_per_split = tiles // NUM_SPLITS

    if n_pad != n:
        # Pad so that padded elements contribute exactly 0 to all four sums.
        x = jnp.pad(x, (0, n_pad - n), constant_values=X_PAD)
        t = jnp.pad(t, (0, n_pad - n), constant_values=0)
    x = x.reshape(rows_padded, LANE)
    t = t.reshape(rows_padded, LANE)

    partials = pl.pallas_call(
        _dice_bce_kernel,
        out_shape=jax.ShapeDtypeStruct((NUM_SPLITS, 4, SUBLANES, LANE),
                                       jnp.float32),
        grid=(NUM_SPLITS, tiles_per_split),
        in_specs=[
            pl.BlockSpec((block_rows, LANE),
                         lambda c, i: (c * tiles_per_split + i, 0)),
            pl.BlockSpec((block_rows, LANE),
                         lambda c, i: (c * tiles_per_split + i, 0)),
        ],
        out_specs=pl.BlockSpec((1, 4, SUBLANES, LANE),
                               lambda c, i: (c, 0, 0, 0)),
        compiler_params=pltpu.CompilerParams(
            dimension_semantics=("parallel", "arbitrary")),
    )(x, t)

    # Tiny finalize: one cross-lane reduction over (2, 4, 8, 128) partials.
    sums = jnp.sum(partials, axis=(0, 2, 3))             # (4,)
    inter, sum_p, sum_t, bce_sum = sums[0], sums[1], sums[2], sums[3]
    dice_loss = 1.0 - (2.0 * inter + smooth) / (sum_p + sum_t + smooth)
    bce_mean = bce_sum / jnp.float32(max(n, 1))
    return bce_mean + dice_loss


def _reference(inputs, targets, smooth=1.0):
    """Faithful JAX port of the PyTorch module (sigmoid -> clamped-log BCE)."""
    p = jax.nn.sigmoid(inputs.reshape(-1).astype(jnp.float32))
    t = targets.reshape(-1).astype(jnp.float32)
    inter = jnp.sum(p * t)
    dice = 1.0 - (2.0 * inter + smooth) / (jnp.sum(p) + jnp.sum(t) + smooth)
    bce = jnp.mean(-(t * jnp.maximum(jnp.log(p), -100.0)
                     + (1.0 - t) * jnp.maximum(jnp.log1p(-p), -100.0)))
    return bce + dice


if __name__ == "__main__":
    key = jax.random.PRNGKey(0)
    k1, k2, k3, k4 = jax.random.split(key, 4)

    # Case 1: NCHW = (2, 4, 16, 16), f32 logits, f32 binary targets.
    x1 = jax.random.normal(k1, (2, 4, 16, 16), dtype=jnp.float32)
    y1 = (jax.random.uniform(k2, (2, 4, 16, 16)) > 0.5).astype(jnp.float32)
    loss1 = dice_bce_loss(x1, y1)
    jax.block_until_ready(loss1)
    ref1 = _reference(x1, y1)
    assert jnp.allclose(loss1, ref1, rtol=1e-4, atol=1e-5), (loss1, ref1)

    # Case 2: non-lane-aligned element count + bf16 logits (padding path,
    # native-dtype pass-through).
    x2 = jax.random.normal(k3, (1, 3, 33, 45), dtype=jnp.bfloat16)
    y2 = (jax.random.uniform(k4, (1, 3, 33, 45)) > 0.5).astype(jnp.float32)
    loss2 = dice_bce_loss(x2, y2)
    jax.block_until_ready(loss2)
    ref2 = _reference(x2, y2)
    assert jnp.allclose(loss2, ref2, rtol=1e-4, atol=1e-5), (loss2, ref2)

    print("KERNEL_OK")
</pallas_src>

<mosaic_0001>
module attributes {stable_mosaic.version = 11 : i64} {
  func.func @_dice_bce_kernel(%arg0: i32, %arg1: i32, %arg2: memref<16x128xf32, #tpu.memory_space<vmem>>, %arg3: memref<16x128xf32, #tpu.memory_space<vmem>>, %arg4: memref<1x4x8x128xf32, #tpu.memory_space<vmem>>) attributes {dimension_semantics = [#tpu.dimension_semantics<parallel>, #tpu.dimension_semantics<arbitrary>], iteration_bounds = array<i64: 2, 1>, scalar_prefetch = 0 : i64, scratch_operands = 0 : i64, tpu.core_type = #tpu.core_type<tc>, window_params = [{transform_indices = @transform_0, window_bounds = array<i64: 16, 128>}, {transform_indices = @transform_1, window_bounds = array<i64: 16, 128>}, {transform_indices = @transform_2, window_bounds = array<i64: 1, 4, 8, 128>}]} {
    %c0_i32 = arith.constant 0 : i32
    %0 = arith.cmpi eq, %arg1, %c0_i32 : i32
    %1 = arith.extui %0 : i1 to i32
    %c0_i32_0 = arith.constant 0 : i32
    %2 = arith.cmpi ne, %1, %c0_i32_0 : i32
    scf.if %2 {
      %cst_47 = arith.constant 0.000000e+00 : f32
      %69 = vector.broadcast %cst_47 : f32 to vector<1x4x8x128xf32>
      %c0_48 = arith.constant 0 : index
      %c0_49 = arith.constant 0 : index
      %c0_50 = arith.constant 0 : index
      %c0_51 = arith.constant 0 : index
      %70 = vector.load %arg4[%c0_48, %c0_49, %c0_50, %c0_51] : memref<1x4x8x128xf32, #tpu.memory_space<vmem>>, vector<1x4x8x128xf32>
      tpu.vector_store %arg4[%c0_48, %c0_49, %c0_50, %c0_51], %69 {strides = array<i32>} : memref<1x4x8x128xf32, #tpu.memory_space<vmem>>, vector<1x4x8x128xf32>,
    } else {
    }
    %c0 = arith.constant 0 : index
    %c0_1 = arith.constant 0 : index
    %3 = vector.load %arg2[%c0, %c0_1] : memref<16x128xf32, #tpu.memory_space<vmem>>, vector<16x128xf32>
    %c0_2 = arith.constant 0 : index
    %c0_3 = arith.constant 0 : index
    %4 = vector.load %arg3[%c0_2, %c0_3] : memref<16x128xf32, #tpu.memory_space<vmem>>, vector<16x128xf32>
    %5 = math.absf %3 : vector<16x128xf32>
    %cst = arith.constant 0.000000e+00 : f32
    %6 = vector.broadcast %cst : f32 to vector<16x128xf32>
    %7 = arith.subf %6, %5 : vector<16x128xf32>
    %8 = math.exp %7 : vector<16x128xf32>
    %cst_4 = arith.constant 0.000000e+00 : f32
    %9 = vector.broadcast %cst_4 : f32 to vector<16x128xf32>
    %10 = arith.cmpf oge, %3, %9 : vector<16x128xf32>
    %cst_5 = arith.constant 1.000000e+00 : f32
    %11 = vector.broadcast %cst_5 : f32 to vector<16x128xf32>
    %12 = arith.select %10, %11, %8 : vector<16x128xi1>, vector<16x128xf32>
    %cst_6 = arith.constant 1.000000e+00 : f32
    %13 = vector.broadcast %cst_6 : f32 to vector<16x128xf32>
    %14 = arith.addf %13, %8 : vector<16x128xf32>
    %15 = arith.divf %12, %14 : vector<16x128xf32>
    %16 = math.log1p %8 : vector<16x128xf32>
    %cst_7 = arith.constant 0.000000e+00 : f32
    %17 = vector.broadcast %cst_7 : f32 to vector<16x128xf32>
    %18 = arith.minimumf %3, %17 : vector<16x128xf32>
    %19 = arith.subf %18, %16 : vector<16x128xf32>
    %cst_8 = arith.constant 0.000000e+00 : f32
    %20 = vector.broadcast %cst_8 : f32 to vector<16x128xf32>
    %21 = arith.maximumf %3, %20 : vector<16x128xf32>
    %cst_9 = arith.constant 0.000000e+00 : f32
    %22 = vector.broadcast %cst_9 : f32 to vector<16x128xf32>
    %23 = arith.subf %22, %21 : vector<16x128xf32>
    %24 = arith.subf %23, %16 : vector<16x128xf32>
    %cst_10 = arith.constant -1.000000e+02 : f32
    %25 = vector.broadcast %cst_10 : f32 to vector<16x128xf32>
    %26 = arith.maximumf %19, %25 : vector<16x128xf32>
    %27 = arith.mulf %4, %26 : vector<16x128xf32>
    %cst_11 = arith.constant 1.000000e+00 : f32
    %28 = vector.broadcast %cst_11 : f32 to vector<16x128xf32>
    %29 = arith.subf %28, %4 : vector<16x128xf32>
    %cst_12 = arith.constant -1.000000e+02 : f32
    %30 = vector.broadcast %cst_12 : f32 to vector<16x128xf32>
    %31 = arith.maximumf %24, %30 : vector<16x128xf32>
    %32 = arith.mulf %29, %31 : vector<16x128xf32>
    %33 = arith.addf %27, %32 : vector<16x128xf32>
    %cst_13 = arith.constant 0.000000e+00 : f32
    %34 = vector.broadcast %cst_13 : f32 to vector<16x128xf32>
    %35 = arith.subf %34, %33 : vector<16x128xf32>
    %c0_14 = arith.constant 0 : index
    %c0_15 = arith.constant 0 : index
    %c0_16 = arith.constant 0 : index
    %c0_17 = arith.constant 0 : index
    %36 = vector.load %arg4[%c0_14, %c0_15, %c0_16, %c0_17] : memref<1x4x8x128xf32, #tpu.memory_space<vmem>>, vector<1x1x8x128xf32>
    %37 = vector.shape_cast %36 : vector<1x1x8x128xf32> to vector<8x128xf32>
    %38 = arith.mulf %15, %4 : vector<16x128xf32>
    %39 = vector.shape_cast %38 : vector<16x128xf32> to vector<2x8x128xf32>
    %cst_18 = arith.constant dense<0.000000e+00> : vector<8x128xf32>
    %40 = vector.multi_reduction <add>, %39, %cst_18 [0] : vector<2x8x128xf32> to vector<8x128xf32>
    %41 = arith.addf %37, %40 : vector<8x128xf32>
    %c0_19 = arith.constant 0 : index
    %c0_20 = arith.constant 0 : index
    %c0_21 = arith.constant 0 : index
    %c0_22 = arith.constant 0 : index
    %42 = vector.load %arg4[%c0_19, %c0_20, %c0_21, %c0_22] : memref<1x4x8x128xf32, #tpu.memory_space<vmem>>, vector<1x1x8x128xf32>
    %43 = vector.shape_cast %42 : vector<1x1x8x128xf32> to vector<8x128xf32>
    %44 = vector.shape_cast %41 : vector<8x128xf32> to vector<1x1x8x128xf32>
    tpu.vector_store %arg4[%c0_19, %c0_20, %c0_21, %c0_22], %44 {strides = array<i32>} : memref<1x4x8x128xf32, #tpu.memory_space<vmem>>, vector<1x1x8x128xf32>,
    %c0_23 = arith.constant 0 : index
    %c1 = arith.constant 1 : index
    %c0_24 = arith.constant 0 : index
    %c0_25 = arith.constant 0 : index
    %45 = vector.load %arg4[%c0_23, %c1, %c0_24, %c0_25] : memref<1x4x8x128xf32, #tpu.memory_space<vmem>>, vector<1x1x8x128xf32>
    %46 = vector.shape_cast %45 : vector<1x1x8x128xf32> to vector<8x128xf32>
    %47 = vector.shape_cast %15 : vector<16x128xf32> to vector<2x8x128xf32>
    %cst_26 = arith.constant dense<0.000000e+00> : vector<8x128xf32>
    %48 = vector.multi_reduction <add>, %47, %cst_26 [0] : vector<2x8x128xf32> to vector<8x128xf32>
    %49 = arith.addf %46, %48 : vector<8x128xf32>
    %c0_27 = arith.constant 0 : index
    %c1_28 = arith.constant 1 : index
    %c0_29 = arith.constant 0 : index
    %c0_30 = arith.constant 0 : index
    %50 = vector.load %arg4[%c0_27, %c1_28, %c0_29, %c0_30] : memref<1x4x8x128xf32, #tpu.memory_space<vmem>>, vector<1x1x8x128xf32>
    %51 = vector.shape_cast %50 : vector<1x1x8x128xf32> to vector<8x128xf32>
    %52 = vector.shape_cast %49 : vector<8x128xf32> to vector<1x1x8x128xf32>
    tpu.vector_store %arg4[%c0_27, %c1_28, %c0_29, %c0_30], %52 {strides = array<i32>} : memref<1x4x8x128xf32, #tpu.memory_space<vmem>>, vector<1x1x8x128xf32>,
    %c0_31 = arith.constant 0 : index
    %c2 = arith.constant 2 : index
    %c0_32 = arith.constant 0 : index
    %c0_33 = arith.constant 0 : index
    %53 = vector.load %arg4[%c0_31, %c2, %c0_32, %c0_33] : memref<1x4x8x128xf32, #tpu.memory_space<vmem>>, vector<1x1x8x128xf32>
    %54 = vector.shape_cast %53 : vector<1x1x8x128xf32> to vector<8x128xf32>
    %55 = vector.shape_cast %4 : vector<16x128xf32> to vector<2x8x128xf32>
    %cst_34 = arith.constant dense<0.000000e+00> : vector<8x128xf32>
    %56 = vector.multi_reduction <add>, %55, %cst_34 [0] : vector<2x8x128xf32> to vector<8x128xf32>
    %57 = arith.addf %54, %56 : vector<8x128xf32>
    %c0_35 = arith.constant 0 : index
    %c2_36 = arith.constant 2 : index
    %c0_37 = arith.constant 0 : index
    %c0_38 = arith.constant 0 : index
    %58 = vector.load %arg4[%c0_35, %c2_36, %c0_37, %c0_38] : memref<1x4x8x128xf32, #tpu.memory_space<vmem>>, vector<1x1x8x128xf32>
    %59 = vector.shape_cast %58 : vector<1x1x8x128xf32> to vector<8x128xf32>
    %60 = vector.shape_cast %57 : vector<8x128xf32> to vector<1x1x8x128xf32>
    tpu.vector_store %arg4[%c0_35, %c2_36, %c0_37, %c0_38], %60 {strides = array<i32>} : memref<1x4x8x128xf32, #tpu.memory_space<vmem>>, vector<1x1x8x128xf32>,
    %c0_39 = arith.constant 0 : index
    %c3 = arith.constant 3 : index
    %c0_40 = arith.constant 0 : index
    %c0_41 = arith.constant 0 : index
    %61 = vector.load %arg4[%c0_39, %c3, %c0_40, %c0_41] : memref<1x4x8x128xf32, #tpu.memory_space<vmem>>, vector<1x1x8x128xf32>
    %62 = vector.shape_cast %61 : vector<1x1x8x128xf32> to vector<8x128xf32>
    %63 = vector.shape_cast %35 : vector<16x128xf32> to vector<2x8x128xf32>
    %cst_42 = arith.constant dense<0.000000e+00> : vector<8x128xf32>
    %64 = vector.multi_reduction <add>, %63, %cst_42 [0] : vector<2x8x128xf32> to vector<8x128xf32>
    %65 = arith.addf %62, %64 : vector<8x128xf32>
    %c0_43 = arith.constant 0 : index
    %c3_44 = arith.constant 3 : index
    %c0_45 = arith.constant 0 : index
    %c0_46 = arith.constant 0 : index
    %66 = vector.load %arg4[%c0_43, %c3_44, %c0_45, %c0_46] : memref<1x4x8x128xf32, #tpu.memory_space<vmem>>, vector<1x1x8x128xf32>
    %67 = vector.shape_cast %66 : vector<1x1x8x128xf32> to vector<8x128xf32>
    %68 = vector.shape_cast %65 : vector<8x128xf32> to vector<1x1x8x128xf32>
    tpu.vector_store %arg4[%c0_43, %c3_44, %c0_45, %c0_46], %68 {strides = array<i32>} : memref<1x4x8x128xf32, #tpu.memory_space<vmem>>, vector<1x1x8x128xf32>,
    return
  }
  func.func @transform_0(%arg0: i32, %arg1: i32) -> (i32, i32) {
    %c1_i32 = arith.constant 1 : i32
    %0 = arith.muli %arg0, %c1_i32 : i32
    %1 = arith.addi %0, %arg1 : i32
    %c0_i32 = arith.constant 0 : i32
    %c0_i32_0 = arith.constant 0 : i32
    return %1, %c0_i32 : i32, i32
  }
  func.func @transform_1(%arg0: i32, %arg1: i32) -> (i32, i32) {
    %c1_i32 = arith.constant 1 : i32
    %0 = arith.muli %arg0, %c1_i32 : i32
    %1 = arith.addi %0, %arg1 : i32
    %c0_i32 = arith.constant 0 : i32
    %c0_i32_0 = arith.constant 0 : i32
    return %1, %c0_i32 : i32, i32
  }
  func.func @transform_2(%arg0: i32, %arg1: i32) -> (i32, i32, i32, i32) {
    %c0_i32 = arith.constant 0 : i32
    %c0_i32_0 = arith.constant 0 : i32
    %c0_i32_1 = arith.constant 0 : i32
    %c0_i32_2 = arith.constant 0 : i32
    return %arg0, %c0_i32, %c0_i32_0, %c0_i32_1 : i32, i32, i32, i32
  }
}

</mosaic_0001>

<llo_original>
// kernel: dice_bce_loss.1
$region0: #{dice_bce_loss.1}
  #allocation0 [shape = 'u32[]', space=smem, size = 0x4, offset = 0x4, fixed_abs, tag = 'smem constant byte address 0x4 - core index']
  #allocation1 [shape = 'u32[72,128]{1,0:T(1,128)}', space=vmem, size = 0x9000, scoped, tag = 'internal scratch']
  %s0 = inlined_call_operand.vmem [shape: f32[32,128], index: 0, kind: input, shape index: {}]
  %s1 = inlined_call_operand.vmem [shape: f32[32,128], index: 1, kind: input, shape index: {}]
  %s2 = inlined_call_operand.vmem [shape: f32[2,4,8,128], index: 2, kind: output, shape index: {}]
  %s3 = sld [smem:[#allocation0]]
  $region45: #{dice_bce_loss.1} parent=0
    _
  %s5 = ssub.s32 1, %s3
  %s6 = scalar_select 0, %s5, %s3
  loop: start=0, step=1, limit=4
  $region2: #{dice_bce_loss.1} parent=0 // loop_pre_header
    _
  $region3: #{dice_bce_loss.1} parent=0 // loop_header
    %s8 = sphi 0, %s12
    %p9 = scmp.ge.s32.totalorder %s8, 4
    %s15 = sphi 0, %s27
    %s16 = sphi 0, %s23
    %s17 = sphi 0, %s15
    %s18 = sphi 0, %s16
    %s19 = sphi 0, %s17
    %s20 = sphi 0, %s18
    %s32 = sphi 0, %s34
    %s35 = sphi 0, %s32
    %s36 = sphi 0, %s35
    %s52 = sphi 0, %s36
    %s60 = sphi 0, %s62
    %s63 = sphi 0, %s60
    %s64 = sphi 0, %s63
    %s80 = sphi 0, %s64
    %s86 = sphi 0, %s88
    %s89 = sphi 0, %s86
    %s90 = sphi 0, %s89
    %s106 = sphi 0, %s90
  $region4: #{dice_bce_loss.1} parent=0 // loop_header_branch
    %11 = sbr.rel (%p9) target = $region8
  $region5: #{dice_bce_loss.1} parent=0 // loop_body
    %s13 = ssub.s32 %s8, 1
    %s14 = ssub.s32 %s8, 2
    %s21 = sadd.s32 1, %s16
    %p22 = scmp.ge.s32.totalorder %s21, 1
    %s23 = scalar_select %p22, 0, %s21
    %s24 = sadd.s32 1, %s15
    %s25 = scalar_select %p22, %s24, %s15
    %p26 = scmp.ge.s32.totalorder %s25, 2
    %s27 = scalar_select %p26, 0, %s25
    %s28 = sadd.s32 %s15, %s16
    %s29 = sadd.s32 %s27, %s23
    %s30 = ssub.s32 %s28, %s29
    %p31 = scmp.eq.s32.totalorder %s30, 0
    %s33 = sadd.s32 %s32, 1
    %s34 = scalar_select %p31, %s32, %s33
    %p37 = pneg %p31
    %p38 = scmp.eq.s32.totalorder %s8, 1
    %p39 = por %p37, %p38
    %p40 = scmp.ne.s32.totalorder %s32, %s35
    %p41 = scmp.eq.s32.totalorder %s8, 0
    %p42 = por %p40, %p41
    %p43 = scmp.ne.s32.totalorder %s32, %s35
    %p44 = scmp.eq.s32.totalorder %s13, 1
    %p45 = por %p43, %p44
    %p46 = scmp.ne.s32.totalorder %s35, %s36
    %p47 = scmp.eq.s32.totalorder %s13, 0
    %p48 = por %p46, %p47
    %p49 = scmp.ne.s32.totalorder %s35, %s36
    %p50 = scmp.eq.s32.totalorder %s14, 1
    %p51 = por %p49, %p50
    %p53 = scmp.ne.s32.totalorder %s36, %s52
    %p54 = scmp.eq.s32.totalorder %s14, 0
    %p55 = por %p53, %p54
    %s56 = sadd.s32 %s15, %s16
    %s57 = sadd.s32 %s27, %s23
    %s58 = ssub.s32 %s56, %s57
    %p59 = scmp.eq.s32.totalorder %s58, 0
    %s61 = sadd.s32 %s60, 1
    %s62 = scalar_select %p59, %s60, %s61
    %p65 = pneg %p59
    %p66 = scmp.eq.s32.totalorder %s8, 1
    %p67 = por %p65, %p66
    %p68 = scmp.ne.s32.totalorder %s60, %s63
    %p69 = scmp.eq.s32.totalorder %s8, 0
    %p70 = por %p68, %p69
    %p71 = scmp.ne.s32.totalorder %s60, %s63
    %p72 = scmp.eq.s32.totalorder %s13, 1
    %p73 = por %p71, %p72
    %p74 = scmp.ne.s32.totalorder %s63, %s64
    %p75 = scmp.eq.s32.totalorder %s13, 0
    %p76 = por %p74, %p75
    %p77 = scmp.ne.s32.totalorder %s63, %s64
    %p78 = scmp.eq.s32.totalorder %s14, 1
    %p79 = por %p77, %p78
    %p81 = scmp.ne.s32.totalorder %s64, %s80
    %p82 = scmp.eq.s32.totalorder %s14, 0
    %p83 = por %p81, %p82
    %s84 = ssub.s32 %s15, %s27
    %p85 = scmp.eq.s32.totalorder %s84, 0
    %s87 = sadd.s32 %s86, 1
    %s88 = scalar_select %p85, %s86, %s87
    %p91 = pneg %p85
    %p92 = scmp.eq.s32.totalorder %s8, 1
    %p93 = por %p91, %p92
    %p94 = scmp.ne.s32.totalorder %s86, %s89
    %p95 = scmp.eq.s32.totalorder %s8, 0
    %p96 = por %p94, %p95
    %p97 = scmp.ne.s32.totalorder %s86, %s89
    %p98 = scmp.eq.s32.totalorder %s13, 1
    %p99 = por %p97, %p98
    %p100 = scmp.ne.s32.totalorder %s89, %s90
    %p101 = scmp.eq.s32.totalorder %s13, 0
    %p102 = por %p100, %p101
    %p103 = scmp.ne.s32.totalorder %s89, %s90
    %p104 = scmp.eq.s32.totalorder %s14, 1
    %p105 = por %p103, %p104
    %p107 = scmp.ne.s32.totalorder %s90, %s106
    %p108 = scmp.eq.s32.totalorder %s14, 0
    %p109 = por %p107, %p108
    %p110 = scmp.le.s32.totalorder 1, %s8
    %p111 = scmp.lt.s32.totalorder %s8, 3
    %p112 = pnand %p110, %p111
    %p113 = pneg %p112
    // Predicated region
    $region9: #{dice_bce_loss.1} parent=5 // pred_check
      _
    $region10: #{dice_bce_loss.1} parent=5 // pred_check_branch
      %115 = sbr.rel (%p112) target = $region12
    $region11: #{dice_bce_loss.1} parent=5 // pred_region
      %s116 = ssub.s32 %s8, 1
    $region12: #{dice_bce_loss.1} parent=5 // pred_fallthru
      _
    %p117 = scmp.lt.s32.totalorder %s8, 2
    // Predicated region
    $region13: #{dice_bce_loss.1} parent=5 // pred_check
      %p118 = pneg %p117
    $region14: #{dice_bce_loss.1} parent=5 // pred_check_branch
      %120 = sbr.rel (%p118) target = $region16
    $region15: #{dice_bce_loss.1} parent=5 // pred_region
      // Predicated region
      $region17: #{dice_bce_loss.1} parent=15 // pred_check
        %p121 = pneg %p42
      $region18: #{dice_bce_loss.1} parent=15 // pred_check_branch
        %123 = sbr.rel (%p121) target = $region20
      $region19: #{dice_bce_loss.1} parent=15 // pred_region
        %s124 = sadd.s32 %s15, %s16
        %s125 = smul.u32 2, %s124
        %p126 = scmp.lt.s32.totalorder %s125, 3
        %s127 = scalar_select %p126, %s125, 3
        %s128 = smul.addr %s127, 8
        %s129 = scalar_lea.vmem %s0, %s128
        %s130 = sadd.s32 %s15, %s16
        %s131 = smul.u32 2, %s130
      $region20: #{dice_bce_loss.1} parent=15 // pred_fallthru
        _
      // Predicated region
      $region21: #{dice_bce_loss.1} parent=15 // pred_check
        %p132 = pneg %p70
      $region22: #{dice_bce_loss.1} parent=15 // pred_check_branch
        %134 = sbr.rel (%p132) target = $region24
      $region23: #{dice_bce_loss.1} parent=15 // pred_region
        %s135 = sadd.s32 %s15, %s16
        %s136 = smul.u32 2, %s135
        %p137 = scmp.lt.s32.totalorder %s136, 3
        %s138 = scalar_select %p137, %s136, 3
        %s139 = smul.addr %s138, 8
        %s140 = scalar_lea.vmem %s1, %s139
        %s141 = sadd.s32 %s15, %s16
        %s142 = smul.u32 2, %s141
      $region24: #{dice_bce_loss.1} parent=15 // pred_fallthru
        _
    $region16: #{dice_bce_loss.1} parent=5 // pred_fallthru
      _
    %p143 = scmp.le.s32.totalorder 1, %s8
    %p144 = scmp.lt.s32.totalorder %s8, 3
    %p145 = pnand %p143, %p144
    %p146 = pneg %p145
    // Predicated region
    $region25: #{dice_bce_loss.1} parent=5 // pred_check
      _
    $region26: #{dice_bce_loss.1} parent=5 // pred_check_branch
      %148 = sbr.rel (%p145) target = $region28
    $region27: #{dice_bce_loss.1} parent=5 // pred_region
      %s149 = ssub.s32 %s8, 1
      %s150 = sadd.s32 %s17, %s18
      %s151 = smul.u32 2, %s150
      %p152 = scmp.lt.s32.totalorder %s151, 3
      %s153 = scalar_select %p152, %s151, 3
      %s154 = smul.addr %s153, 8
      %s155 = scalar_lea.vmem %s0, %s154
      %p156 = pneg %p48
      %p157 = pneg %p45
      %s158 = sadd.s32 %s17, %s18
      %s159 = smul.u32 2, %s158
      %p160 = scmp.lt.s32.totalorder %s159, 3
      %s161 = scalar_select %p160, %s159, 3
      %s162 = smul.addr %s161, 8
      %s163 = scalar_lea.vmem %s1, %s162
      %p164 = pneg %p76
      %p165 = pneg %p73
      %p166 = pneg %p102
      %p167 = pneg %p99
      %p168 = scmp.lt.s32.totalorder %s17, 1
      %s169 = scalar_select %p168, %s17, 1
      %s170 = smul.addr %s169, 4
      %s171 = smul.addr %s170, 8
      %s172 = scalar_lea.vmem %s2, %s171
      %s173 = sadd.s32 %s17, %s18
      %s174 = smul.u32 2, %s173
      %p175 = scmp.lt.s32.totalorder %s174, 3
      %s176 = scalar_select %p175, %s174, 3
      %s177 = smul.addr %s176, 8
      %s178 = scalar_lea.vmem %s0, %s177
      %s179 = sadd.s32 %s17, %s18
      %s180 = smul.u32 2, %s179
      %s181 = sadd.s32 %s17, %s18
      %s182 = smul.u32 2, %s181
      %p183 = scmp.lt.s32.totalorder %s182, 3
      %s184 = scalar_select %p183, %s182, 3
      %s185 = smul.addr %s184, 8
      %s186 = scalar_lea.vmem %s1, %s185
      %s187 = sadd.s32 %s17, %s18
      %s188 = smul.u32 2, %s187
      %p189 = scmp.lt.s32.totalorder %s17, 1
      %s190 = scalar_select %p189, %s17, 1
      %s191 = smul.addr %s190, 4
      %s192 = smul.addr %s191, 8
      %s193 = scalar_lea.vmem %s2, %s192
      %p194 = scmp.eq.s32.totalorder %s18, 0
      // Predicated region
      $region29: #{dice_bce_loss.1} parent=27 // pred_check
        %p195 = pneg %p194
      $region30: #{dice_bce_loss.1} parent=27 // pred_check_branch
        %197 = sbr.rel (%p195) target = $region32
      $region31: #{dice_bce_loss.1} parent=27 // pred_region
        %198 = vst [vmem:[%s193] sm:$0xff] 0.0
        %199 = vst [vmem:[%s193 + $0x8] sm:$0xff] 0.0
        %200 = vst [vmem:[%s193 + $0x10] sm:$0xff] 0.0
        %201 = vst [vmem:[%s193 + $0x18] sm:$0xff] 0.0
      $region32: #{dice_bce_loss.1} parent=27 // pred_fallthru
        _
      %v202 = vld [vmem:[%s178] sm:$0xff]
      %v203 = vld [vmem:[%s178 + $0x8] sm:$0xff]
      %v204 = vld [vmem:[%s186] sm:$0xff]
      %v205 = vld [vmem:[%s186 + $0x8] sm:$0xff]
      %v206 = vand.u32 2147483647, %v202
      %v207 = vand.u32 2147483647, %v203
      %v208 = vsub.f32 0.0, %v206
      %v209 = vsub.f32 0.0, %v207
      %v210 = vmul.f32 %v208, 1.442695
      %v211 = vpow.pop %v210
      %v212 = vmul.f32 %v209, 1.442695
      %v213 = vpow.pop %v212
      %vm214 = vcmp.ge.f32.partialorder %v202, 0.0
      %vm215 = vcmp.ge.f32.partialorder %v203, 0.0
      %v216 = vsel %vm214, 1.0, %v211
      %v217 = vsel %vm215, 1.0, %v213
      %v218 = vadd.f32 %v211, 1.0
      %v219 = vadd.f32 %v213, 1.0
      %v220 = vrcp.pop %v218
      %v221 = vmul.f32 %v218, %v220
      %v222 = vsub.f32 1.0, %v221
      %v223 = vmul.f32 %v220, %v222
      %v224 = vadd.f32 %v220, %v223
      %vm225 = vweird.f32 %v218
      %vm226 = vweird.f32 %v220
      %vm227 = vmor %vm225, %vm226
      %v228 = vsel %vm227, %v220, %v224
      %v229 = vand.u32 2147483647, %v218
      %vm230 = vcmp.eq.f32.partialorder %v229, 8.507059e+37
      %v231 = vand.u32 %v218, 2147483648
      %v232 = vor.u32 1.1754944e-38, %v231
      %v233 = vsel %vm230, %v232, %v228
      %v234 = vmul.f32 %v216, %v233
      %v235 = vrcp.pop %v219
      %v236 = vmul.f32 %v219, %v235
      %v237 = vsub.f32 1.0, %v236
      %v238 = vmul.f32 %v235, %v237
      %v239 = vadd.f32 %v235, %v238
      %vm240 = vweird.f32 %v219
      %vm241 = vweird.f32 %v235
      %vm242 = vmor %vm240, %vm241
      %v243 = vsel %vm242, %v235, %v239
      %v244 = vand.u32 2147483647, %v219
      %vm245 = vcmp.eq.f32.partialorder %v244, 8.507059e+37
      %v246 = vand.u32 %v219, 2147483648
      %v247 = vor.u32 1.1754944e-38, %v246
      %v248 = vsel %vm245, %v247, %v243
      %v249 = vmul.f32 %v217, %v248
      %v250 = vadd.f32 %v211, 1.0
      %v251 = vlog2.pop %v250
      %v252 = vmul.f32 %v251, 0.6931472
      %v253 = vmul.f32 -0.5, %v211
      %v254 = vadd.f32 %v253, 1.0
      %v255 = vmul.f32 %v254, %v211
      %v256 = vand.u32 2147483647, %v211
      %vm257 = vcmp.lt.f32.partialorder %v256, 0.0004427343
      %v258 = vsel %vm257, %v255, %v252
      %v259 = vadd.f32 %v213, 1.0
      %v260 = vlog2.pop %v259
      %v261 = vmul.f32 %v260, 0.6931472
      %v262 = vmul.f32 -0.5, %v213
      %v263 = vadd.f32 %v262, 1.0
      %v264 = vmul.f32 %v263, %v213
      %v265 = vand.u32 2147483647, %v213
      %vm266 = vcmp.lt.f32.partialorder %v265, 0.0004427343
      %v267 = vsel %vm266, %v264, %v261
      %v268 = vmin.f32 %v202, 0.0
      %v269 = vmin.f32 %v203, 0.0
      %v270 = vsub.f32 %v268, %v258
      %v271 = vsub.f32 %v269, %v267
      %v272 = vmax.f32 %v202, 0.0
      %v273 = vmax.f32 %v203, 0.0
      %v274 = vsub.f32 0.0, %v272
      %v275 = vsub.f32 0.0, %v273
      %v276 = vsub.f32 %v274, %v258
      %v277 = vsub.f32 %v275, %v267
      %v278 = vmax.f32 %v270, -100.0
      %v279 = vmax.f32 %v271, -100.0
      %v280 = vmul.f32 %v204, %v278
      %v281 = vmul.f32 %v205, %v279
      %v282 = vsub.f32 1.0, %v204
      %v283 = vsub.f32 1.0, %v205
      %v284 = vmax.f32 %v276, -100.0
      %v285 = vmax.f32 %v277, -100.0
      %v286 = vmul.f32 %v282, %v284
      %v287 = vmul.f32 %v283, %v285
      %v288 = vadd.f32 %v280, %v286
      %v289 = vadd.f32 %v281, %v287
      %v290 = vsub.f32 0.0, %v288
      %v291 = vsub.f32 0.0, %v289
      %v292 = vld [vmem:[%s193] sm:$0xff]
      %v293 = vmul.f32 %v234, %v204
      %v294 = vmul.f32 %v249, %v205
      %v295 = vadd.f32 %v293, %v294
      %v296 = vadd.f32 %v292, %v295
      %297 = vst [vmem:[%s193] sm:$0xff] %v296
      %s298 = scalar_lea.vmem %s193, 8
      %v299 = vld [vmem:[%s298] sm:$0xff]
      %v300 = vadd.f32 %v234, %v249
      %v301 = vadd.f32 %v299, %v300
      %302 = vst [vmem:[%s298] sm:$0xff] %v301
      %s303 = scalar_lea.vmem %s193, 16
      %v304 = vld [vmem:[%s303] sm:$0xff]
      %v305 = vadd.f32 %v204, %v205
      %v306 = vadd.f32 %v304, %v305
      %307 = vst [vmem:[%s303] sm:$0xff] %v306
      %s308 = scalar_lea.vmem %s193, 24
      %v309 = vld [vmem:[%s308] sm:$0xff]
      %v310 = vadd.f32 %v290, %v291
      %v311 = vadd.f32 %v309, %v310
      %312 = vst [vmem:[%s308] sm:$0xff] %v311
      %p313 = scmp.lt.s32.totalorder %s17, 1
      %s314 = scalar_select %p313, %s17, 1
      %s315 = smul.addr %s314, 4
      %s316 = smul.addr %s315, 8
      %s317 = scalar_lea.vmem %s2, %s316
      // Predicated region
      $region33: #{dice_bce_loss.1} parent=27 // pred_check
        %p318 = pneg %p99
      $region34: #{dice_bce_loss.1} parent=27 // pred_check_branch
        %320 = sbr.rel (%p318) target = $region36
      $region35: #{dice_bce_loss.1} parent=27 // pred_region
        _
      $region36: #{dice_bce_loss.1} parent=27 // pred_fallthru
        _
    $region28: #{dice_bce_loss.1} parent=5 // pred_fallthru
      _
    %p321 = scmp.le.s32.totalorder 2, %s8
    // Predicated region
    $region37: #{dice_bce_loss.1} parent=5 // pred_check
      %p322 = pneg %p321
    $region38: #{dice_bce_loss.1} parent=5 // pred_check_branch
      %324 = sbr.rel (%p322) target = $region40
    $region39: #{dice_bce_loss.1} parent=5 // pred_region
      %s325 = ssub.s32 %s8, 2
      // Predicated region
      $region41: #{dice_bce_loss.1} parent=39 // pred_check
        %p326 = pneg %p105
      $region42: #{dice_bce_loss.1} parent=39 // pred_check_branch
        %328 = sbr.rel (%p326) target = $region44
      $region43: #{dice_bce_loss.1} parent=39 // pred_region
        %p329 = scmp.lt.s32.totalorder %s19, 1
        %s330 = scalar_select %p329, %s19, 1
        %s331 = smul.addr %s330, 4
        %s332 = smul.addr %s331, 8
        %s333 = scalar_lea.vmem %s2, %s332
      $region44: #{dice_bce_loss.1} parent=39 // pred_fallthru
        _
    $region40: #{dice_bce_loss.1} parent=5 // pred_fallthru
      _
  $region6: #{dice_bce_loss.1} parent=0 // loop_footer
    %s12 = sadd.s32 1, %s8
  $region7: #{dice_bce_loss.1} parent=0 // loop_footer_branch
    %7 = sbr.rel target = $region3
  $region8: #{dice_bce_loss.1} parent=0 // loop_exit
    _

</llo_original>
